<compile_context>
chip_gen: v7x
topology: tpu7x:2x2x1
jax: 0.10.0
libtpu: 0.0.40
codegen_flags: <defaults>
</compile_context>

<pallas_src>
import jax
import jax.numpy as jnp
from jax.experimental import pallas as pl
from jax.experimental.pallas import tpu as pltpu


# ------------------------------ configuration ------------------------------ #
BATCH = 8
REPR_DIM = 32
FEATURE_DIM = 16
NUM_ACTIONS = 4
HIDDEN_DIM = 32
H2 = 2 * HIDDEN_DIM          # both Q-heads fused along the feature axis
LANES = 64                   # slab lane width (max weight block is H2 = 64)
SLAB_DTYPE = jnp.bfloat16    # slab storage dtype; in-kernel compute stays f32


def _align8(x: int) -> int:
    return (x + 7) // 8 * 8


# Slab row layout (block starts aligned to 8-row sublane tiles).
ROW_WT = 0                                    # trunk weight          (32, 16)
ROW_WS = _align8(ROW_WT + REPR_DIM)           # 32: fused state part  (16, 64)
ROW_WA = _align8(ROW_WS + FEATURE_DIM)        # 48: fused action part (4, 64)
ROW_W1 = _align8(ROW_WA + NUM_ACTIONS)        # 56: block-diag hidden (64, 64)
ROW_W2 = _align8(ROW_W1 + H2)                 # 120: block-diag output (64, 2)
ROW_BT = _align8(ROW_W2 + H2)                 # 184: trunk bias        (1, 16)
ROW_B0 = ROW_BT + 1                           # 185: fused layer-0 bias (1, 64)
ROW_B1 = ROW_BT + 2                           # 186: fused hidden bias  (1, 64)
ROW_B2 = ROW_BT + 3                           # 187: fused output bias  (1, 2)
SLAB_ROWS = _align8(ROW_BT + 4)               # 192


# ------------------------------ Pallas kernel ------------------------------ #
def double_q_kernel(s_ref, a_ref, w_ref, out_ref):
    s = s_ref[...]                                        # (B, 32) f32
    a = a_ref[...]                                        # (B, 4)  f32

    def wblk(row, nrows, ncols):
        # Static slab slice, upcast to f32 (slab may be bf16; keep all VPU
        # elementwise math f32 for v5e compatibility and accuracy).
        return w_ref[row:row + nrows, 0:ncols].astype(jnp.float32)

    # Trunk: h = relu(s @ Wt + bt)
    wt = wblk(ROW_WT, REPR_DIM, FEATURE_DIM)
    bt = wblk(ROW_BT, 1, FEATURE_DIM)
    h = jnp.maximum(jnp.dot(s, wt, preferred_element_type=jnp.float32) + bt, 0.0)

    # Fused layer 0 of both Q-heads on cat([h, a]):
    #   z = h @ [W1s|W2s] + a @ [W1a|W2a] + [b10|b20]
    # Both partial products go through the MXU (the K=4 action dot is a single
    # vmatmul push instead of a 4-step VPU/XLU chain).
    ws = wblk(ROW_WS, FEATURE_DIM, H2)
    wa = wblk(ROW_WA, NUM_ACTIONS, H2)
    b0 = wblk(ROW_B0, 1, H2)
    z = (jnp.dot(h, ws, preferred_element_type=jnp.float32)
         + jnp.dot(a, wa, preferred_element_type=jnp.float32) + b0)
    z = jnp.maximum(z, 0.0)

    # Fused hidden layer: block-diagonal (64, 64) keeps the two heads separate.
    w1 = wblk(ROW_W1, H2, H2)
    b1 = wblk(ROW_B1, 1, H2)
    z = jnp.maximum(jnp.dot(z, w1, preferred_element_type=jnp.float32) + b1, 0.0)

    # Fused output layer: block-diagonal (64, 2) -> one narrow (B, 2) store.
    w2 = wblk(ROW_W2, H2, 2)
    b2 = wblk(ROW_B2, 1, 2)
    out_ref[...] = jnp.dot(z, w2, preferred_element_type=jnp.float32) + b2


# ------------------------------- JAX wrapper -------------------------------- #
def _cost_estimate(n_rows, slab):
    flops = 2 * n_rows * (REPR_DIM * FEATURE_DIM + FEATURE_DIM * H2
                          + NUM_ACTIONS * H2 + H2 * H2 + H2 * 2)
    bytes_accessed = (4 * n_rows * (REPR_DIM + NUM_ACTIONS + 2)
                      + slab.size * slab.dtype.itemsize)
    return pl.CostEstimate(flops=flops, transcendentals=0,
                           bytes_accessed=int(bytes_accessed))


def double_q_forward(s, a, slab, *, tile_b=256):
    """Returns (q1, q2), each (B, 1) f32.

    B <= tile_b : gridless call (B=8 actor step is pure call overhead + slab
                  DMA; a grid would only add per-step cost).
    B >  tile_b : batch grid; slab has a constant index_map so it is fetched
                  once and stays resident; the batch axis is "parallel" so v7x
                  shards tiles across its two TensorCores.  Raise tile_b to
                  512-1024 on single-TC chips (v5e/v6e).
    """
    B = s.shape[0]

    if B <= tile_b:
        vmem = pl.BlockSpec(memory_space=pltpu.MemorySpace.VMEM)
        out = pl.pallas_call(
            double_q_kernel,
            out_shape=jax.ShapeDtypeStruct((B, 2), jnp.float32),
            in_specs=[vmem, vmem, vmem],
            out_specs=vmem,
            cost_estimate=_cost_estimate(B, slab),
        )(s, a, slab)
        return out[:, 0:1], out[:, 1:2]

    # ---- batch-gridded path ----
    n_tiles = pl.cdiv(B, tile_b)
    bp = n_tiles * tile_b
    if bp != B:
        s = jnp.pad(s, ((0, bp - B), (0, 0)))
        a = jnp.pad(a, ((0, bp - B), (0, 0)))

    out = pl.pallas_call(
        double_q_kernel,
        out_shape=jax.ShapeDtypeStruct((bp, 2), jnp.float32),
        grid_spec=pltpu.PrefetchScalarGridSpec(
            num_scalar_prefetch=0,
            grid=(n_tiles,),
            in_specs=[
                pl.BlockSpec((tile_b, REPR_DIM), lambda i: (i, 0)),
                pl.BlockSpec((tile_b, NUM_ACTIONS), lambda i: (i, 0)),
                # constant index_map -> slab DMA'd once, resident across steps
                pl.BlockSpec((SLAB_ROWS, LANES), lambda i: (0, 0)),
            ],
            out_specs=pl.BlockSpec((tile_b, 2), lambda i: (i, 0)),
        ),
        compiler_params=pltpu.CompilerParams(
            dimension_semantics=("parallel",)),
        cost_estimate=_cost_estimate(bp, slab),
    )(s, a, slab)
    out = out[:B]
    return out[:, 0:1], out[:, 1:2]


# ----------------------------- parameter packing ---------------------------- #
def pack_params(p):
    """Pack every weight/bias into one lane-64, bf16 slab (done once)."""
    slab = jnp.zeros((SLAB_ROWS, LANES), jnp.float32)

    # trunk
    slab = slab.at[ROW_WT:ROW_WT + REPR_DIM, :FEATURE_DIM].set(p["wt"])
    slab = slab.at[ROW_BT, :FEATURE_DIM].set(p["bt"])

    # fused layer 0: split each head's (sa_dim, hidden) weight into state/action
    ws_fused = jnp.concatenate([p["n1_w0"][:FEATURE_DIM], p["n2_w0"][:FEATURE_DIM]], axis=1)
    wa_fused = jnp.concatenate([p["n1_w0"][FEATURE_DIM:], p["n2_w0"][FEATURE_DIM:]], axis=1)
    b0_fused = jnp.concatenate([p["n1_b0"], p["n2_b0"]])
    slab = slab.at[ROW_WS:ROW_WS + FEATURE_DIM, :H2].set(ws_fused)
    slab = slab.at[ROW_WA:ROW_WA + NUM_ACTIONS, :H2].set(wa_fused)
    slab = slab.at[ROW_B0, :H2].set(b0_fused)

    # block-diagonal hidden layer
    zH = jnp.zeros((HIDDEN_DIM, HIDDEN_DIM), jnp.float32)
    w1_bd = jnp.concatenate([jnp.concatenate([p["n1_w1"], zH], 1),
                             jnp.concatenate([zH, p["n2_w1"]], 1)], 0)
    slab = slab.at[ROW_W1:ROW_W1 + H2, :H2].set(w1_bd)
    slab = slab.at[ROW_B1, :H2].set(jnp.concatenate([p["n1_b1"], p["n2_b1"]]))

    # block-diagonal output layer -> (64, 2)
    z1 = jnp.zeros((HIDDEN_DIM, 1), jnp.float32)
    w2_bd = jnp.concatenate([jnp.concatenate([p["n1_w2"], z1], 1),
                             jnp.concatenate([z1, p["n2_w2"]], 1)], 0)
    slab = slab.at[ROW_W2:ROW_W2 + H2, :2].set(w2_bd)
    slab = slab.at[ROW_B2, :2].set(jnp.concatenate([p["n1_b2"], p["n2_b2"]]))

    return slab.astype(SLAB_DTYPE)


def quantize_like_slab(p):
    """Round params the same way slab storage does (bf16 -> f32)."""
    q = lambda x: x.astype(SLAB_DTYPE).astype(jnp.float32)
    return {k: q(v) for k, v in p.items()}


# --------------------------- deterministic init ----------------------------- #
def orthogonal_weight(key, in_dim, out_dim, gain=1.0):
    """Mimics nn.init.orthogonal_ (weight stored as (in_dim, out_dim))."""
    rows, cols = max(in_dim, out_dim), min(in_dim, out_dim)
    m = jax.random.normal(key, (rows, cols), dtype=jnp.float32)
    q, r = jnp.linalg.qr(m)
    q = q * jnp.sign(jnp.diag(r))[None, :]
    w = q if in_dim >= out_dim else q.T
    return (gain * w).astype(jnp.float32)


def make_params(key):
    ks = jax.random.split(key, 14)
    sa_dim = FEATURE_DIM + NUM_ACTIONS

    def bias(k, d):
        # PyTorch zeroes the MLP biases; small random values here so the fused
        # bias packing is actually verified against the reference.
        return 0.1 * jax.random.normal(k, (d,), dtype=jnp.float32)

    return {
        "wt": orthogonal_weight(ks[0], REPR_DIM, FEATURE_DIM), "bt": bias(ks[1], FEATURE_DIM),
        "n1_w0": orthogonal_weight(ks[2], sa_dim, HIDDEN_DIM), "n1_b0": bias(ks[3], HIDDEN_DIM),
        "n1_w1": orthogonal_weight(ks[4], HIDDEN_DIM, HIDDEN_DIM), "n1_b1": bias(ks[5], HIDDEN_DIM),
        "n1_w2": orthogonal_weight(ks[6], HIDDEN_DIM, 1), "n1_b2": bias(ks[7], 1),
        "n2_w0": orthogonal_weight(ks[8], sa_dim, HIDDEN_DIM), "n2_b0": bias(ks[9], HIDDEN_DIM),
        "n2_w1": orthogonal_weight(ks[10], HIDDEN_DIM, HIDDEN_DIM), "n2_b1": bias(ks[11], HIDDEN_DIM),
        "n2_w2": orthogonal_weight(ks[12], HIDDEN_DIM, 1), "n2_b2": bias(ks[13], 1),
    }


# ----------------------------- pure-JAX reference ---------------------------- #
def reference_forward(s, a, p):
    h = jnp.maximum(s @ p["wt"] + p["bt"], 0.0)
    sa = jnp.concatenate([h, a], axis=1)

    def mlp(w0, b0, w1, b1, w2, b2):
        z = jnp.maximum(sa @ w0 + b0, 0.0)
        z = jnp.maximum(z @ w1 + b1, 0.0)
        return z @ w2 + b2

    q1 = mlp(p["n1_w0"], p["n1_b0"], p["n1_w1"], p["n1_b1"], p["n1_w2"], p["n1_b2"])
    q2 = mlp(p["n2_w0"], p["n2_b0"], p["n2_w1"], p["n2_b1"], p["n2_w2"], p["n2_b2"])
    return q1, q2


if __name__ == "__main__":
    key = jax.random.PRNGKey(0)
    k_s, k_a, k_p = jax.random.split(key, 3)

    params = make_params(k_p)
    slab = pack_params(params)                 # packed once, reused every forward
    params_q = quantize_like_slab(params)      # exactly the weights the kernel sees

    # ---- small-batch (gridless) path ----
    s = jax.random.normal(k_s, (BATCH, REPR_DIM), dtype=jnp.float32)
    a = jax.random.normal(k_a, (BATCH, NUM_ACTIONS), dtype=jnp.float32)
    q1, q2 = jax.block_until_ready(double_q_forward(s, a, slab))

    r1, r2 = reference_forward(s, a, params_q)
    assert q1.shape == (BATCH, 1) and q2.shape == (BATCH, 1)
    assert jnp.allclose(q1, r1, atol=1e-3), "q1 mismatch vs reference (small batch)"
    assert jnp.allclose(q2, r2, atol=1e-3), "q2 mismatch vs reference (small batch)"

    # ---- replay-batch (gridded, resident slab, parallel batch axis) path ----
    kb_s, kb_a = jax.random.split(jax.random.PRNGKey(1), 2)
    BL = 600  # intentionally not a multiple of TILE_B to exercise padding
    sL = jax.random.normal(kb_s, (BL, REPR_DIM), dtype=jnp.float32)
    aL = jax.random.normal(kb_a, (BL, NUM_ACTIONS), dtype=jnp.float32)
    q1L, q2L = jax.block_until_ready(double_q_forward(sL, aL, slab, tile_b=256))

    r1L, r2L = reference_forward(sL, aL, params_q)
    assert q1L.shape == (BL, 1) and q2L.shape == (BL, 1)
    assert jnp.allclose(q1L, r1L, atol=1e-3), "q1 mismatch vs reference (gridded)"
    assert jnp.allclose(q2L, r2L, atol=1e-3), "q2 mismatch vs reference (gridded)"

    print("KERNEL_OK")
</pallas_src>

<mosaic_0001>
module attributes {stable_mosaic.version = 11 : i64} {
  func.func @double_q_kernel(%arg0: memref<8x32xf32, #tpu.memory_space<vmem>>, %arg1: memref<8x4xf32, #tpu.memory_space<vmem>>, %arg2: memref<192x64xbf16, #tpu.memory_space<vmem>>, %arg3: memref<8x2xf32, #tpu.memory_space<vmem>>) attributes {dimension_semantics = [], scalar_prefetch = 0 : i64, scratch_operands = 0 : i64, tpu.core_type = #tpu.core_type<tc>} {
    %c0 = arith.constant 0 : index
    %c0_0 = arith.constant 0 : index
    %0 = vector.load %arg0[%c0, %c0_0] : memref<8x32xf32, #tpu.memory_space<vmem>>, vector<8x32xf32>
    %c0_1 = arith.constant 0 : index
    %c0_2 = arith.constant 0 : index
    %1 = vector.load %arg1[%c0_1, %c0_2] : memref<8x4xf32, #tpu.memory_space<vmem>>, vector<8x4xf32>
    %c0_3 = arith.constant 0 : index
    %c0_4 = arith.constant 0 : index
    %2 = vector.load %arg2[%c0_3, %c0_4] : memref<192x64xbf16, #tpu.memory_space<vmem>>, vector<32x16xbf16>
    %3 = arith.extf %2 : vector<32x16xbf16> to vector<32x16xf32>
    %c184 = arith.constant 184 : index
    %c0_5 = arith.constant 0 : index
    %4 = vector.load %arg2[%c184, %c0_5] : memref<192x64xbf16, #tpu.memory_space<vmem>>, vector<1x16xbf16>
    %5 = arith.extf %4 : vector<1x16xbf16> to vector<1x16xf32>
    %cst = arith.constant dense<0.000000e+00> : vector<8x16xf32>
    %6 = tpu.matmul %0, %3, %cst {dimension_numbers = #tpu.dot_dimension_numbers<[1], [0], [0], [1], [0, 0, 1, 1], [], []>} : vector<8x32xf32>, vector<32x16xf32>, vector<8x16xf32> -> vector<8x16xf32>
    %7 = vector.broadcast %5 : vector<1x16xf32> to vector<8x16xf32>
    %8 = arith.addf %6, %7 : vector<8x16xf32>
    %cst_6 = arith.constant 0.000000e+00 : f32
    %9 = vector.broadcast %cst_6 : f32 to vector<8x16xf32>
    %10 = arith.maximumf %8, %9 : vector<8x16xf32>
    %c32 = arith.constant 32 : index
    %c0_7 = arith.constant 0 : index
    %11 = vector.load %arg2[%c32, %c0_7] : memref<192x64xbf16, #tpu.memory_space<vmem>>, vector<16x64xbf16>
    %12 = arith.extf %11 : vector<16x64xbf16> to vector<16x64xf32>
    %c48 = arith.constant 48 : index
    %c0_8 = arith.constant 0 : index
    %13 = vector.load %arg2[%c48, %c0_8] : memref<192x64xbf16, #tpu.memory_space<vmem>>, vector<4x64xbf16>
    %14 = arith.extf %13 : vector<4x64xbf16> to vector<4x64xf32>
    %c185 = arith.constant 185 : index
    %c0_9 = arith.constant 0 : index
    %15 = vector.load %arg2[%c185, %c0_9] : memref<192x64xbf16, #tpu.memory_space<vmem>>, vector<1x64xbf16>
    %16 = arith.extf %15 : vector<1x64xbf16> to vector<1x64xf32>
    %cst_10 = arith.constant dense<0.000000e+00> : vector<8x64xf32>
    %17 = tpu.matmul %10, %12, %cst_10 {dimension_numbers = #tpu.dot_dimension_numbers<[1], [0], [0], [1], [0, 0, 1, 1], [], []>} : vector<8x16xf32>, vector<16x64xf32>, vector<8x64xf32> -> vector<8x64xf32>
    %cst_11 = arith.constant dense<0.000000e+00> : vector<8x64xf32>
    %18 = tpu.matmul %1, %14, %cst_11 {dimension_numbers = #tpu.dot_dimension_numbers<[1], [0], [0], [1], [0, 0, 1, 1], [], []>} : vector<8x4xf32>, vector<4x64xf32>, vector<8x64xf32> -> vector<8x64xf32>
    %19 = arith.addf %17, %18 : vector<8x64xf32>
    %20 = vector.broadcast %16 : vector<1x64xf32> to vector<8x64xf32>
    %21 = arith.addf %19, %20 : vector<8x64xf32>
    %cst_12 = arith.constant 0.000000e+00 : f32
    %22 = vector.broadcast %cst_12 : f32 to vector<8x64xf32>
    %23 = arith.maximumf %21, %22 : vector<8x64xf32>
    %c56 = arith.constant 56 : index
    %c0_13 = arith.constant 0 : index
    %24 = vector.load %arg2[%c56, %c0_13] : memref<192x64xbf16, #tpu.memory_space<vmem>>, vector<64x64xbf16>
    %25 = arith.extf %24 : vector<64x64xbf16> to vector<64x64xf32>
    %c186 = arith.constant 186 : index
    %c0_14 = arith.constant 0 : index
    %26 = vector.load %arg2[%c186, %c0_14] : memref<192x64xbf16, #tpu.memory_space<vmem>>, vector<1x64xbf16>
    %27 = arith.extf %26 : vector<1x64xbf16> to vector<1x64xf32>
    %cst_15 = arith.constant dense<0.000000e+00> : vector<8x64xf32>
    %28 = tpu.matmul %23, %25, %cst_15 {dimension_numbers = #tpu.dot_dimension_numbers<[1], [0], [0], [1], [0, 0, 1, 1], [], []>} : vector<8x64xf32>, vector<64x64xf32>, vector<8x64xf32> -> vector<8x64xf32>
    %29 = vector.broadcast %27 : vector<1x64xf32> to vector<8x64xf32>
    %30 = arith.addf %28, %29 : vector<8x64xf32>
    %cst_16 = arith.constant 0.000000e+00 : f32
    %31 = vector.broadcast %cst_16 : f32 to vector<8x64xf32>
    %32 = arith.maximumf %30, %31 : vector<8x64xf32>
    %c120 = arith.constant 120 : index
    %c0_17 = arith.constant 0 : index
    %33 = vector.load %arg2[%c120, %c0_17] : memref<192x64xbf16, #tpu.memory_space<vmem>>, vector<64x2xbf16>
    %34 = arith.extf %33 : vector<64x2xbf16> to vector<64x2xf32>
    %c187 = arith.constant 187 : index
    %c0_18 = arith.constant 0 : index
    %35 = vector.load %arg2[%c187, %c0_18] : memref<192x64xbf16, #tpu.memory_space<vmem>>, vector<1x2xbf16>
    %36 = arith.extf %35 : vector<1x2xbf16> to vector<1x2xf32>
    %cst_19 = arith.constant dense<0.000000e+00> : vector<8x2xf32>
    %37 = tpu.matmul %32, %34, %cst_19 {dimension_numbers = #tpu.dot_dimension_numbers<[1], [0], [0], [1], [0, 0, 1, 1], [], []>} : vector<8x64xf32>, vector<64x2xf32>, vector<8x2xf32> -> vector<8x2xf32>
    %38 = vector.broadcast %36 : vector<1x2xf32> to vector<8x2xf32>
    %39 = arith.addf %37, %38 : vector<8x2xf32>
    %c0_20 = arith.constant 0 : index
    %c0_21 = arith.constant 0 : index
    %40 = vector.load %arg3[%c0_20, %c0_21] : memref<8x2xf32, #tpu.memory_space<vmem>>, vector<8x2xf32>
    tpu.vector_store %arg3[%c0_20, %c0_21], %39 {strides = array<i32>} : memref<8x2xf32, #tpu.memory_space<vmem>>, vector<8x2xf32>,
    return
  }
}

</mosaic_0001>

<llo_original>
// kernel: tpu_custom_call.1
$region0: #{tpu_custom_call.1}
  #allocation0 [shape = 'u32[]', space=smem, size = 0x4, offset = 0x4, fixed_abs, tag = 'smem constant byte address 0x4 - core index']
  #allocation1 [shape = 'u32[144,128]{1,0:T(1,128)}', space=vmem, size = 0x12000, scoped, tag = 'internal scratch']
  %s0 = inlined_call_operand.vmem [shape: f32[8,32], index: 0, kind: input, shape index: {}]
  %s1 = inlined_call_operand.vmem [shape: f32[8,4], index: 1, kind: input, shape index: {}]
  %s2 = inlined_call_operand.vmem [shape: bf16[192,64], index: 2, kind: input, shape index: {}]
  %s3 = inlined_call_operand.vmem [shape: f32[8,2], index: 3, kind: output, shape index: {}]
  %s4 = sld [smem:[#allocation0]]
  $region22: #{tpu_custom_call.1} parent=0
    _
  %s6 = ssub.s32 1, %s4
  %s7 = scalar_select 0, %s6, %s4
  // Predicated region
  $region2: #{tpu_custom_call.1} parent=0 // pred_check
    _
  $region3: #{tpu_custom_call.1} parent=0 // pred_check_branch
    %9 = sbr.rel (0) target = $region5
  $region4: #{tpu_custom_call.1} parent=0 // pred_region
    _
  $region5: #{tpu_custom_call.1} parent=0 // pred_fallthru
    _
  // Predicated region
  $region6: #{tpu_custom_call.1} parent=0 // pred_check
    _
  $region7: #{tpu_custom_call.1} parent=0 // pred_check_branch
    %11 = sbr.rel (0) target = $region9
  $region8: #{tpu_custom_call.1} parent=0 // pred_region
    _
  $region9: #{tpu_custom_call.1} parent=0 // pred_fallthru
    _
  // Predicated region
  $region10: #{tpu_custom_call.1} parent=0 // pred_check
    _
  $region11: #{tpu_custom_call.1} parent=0 // pred_check_branch
    %13 = sbr.rel (0) target = $region13
  $region12: #{tpu_custom_call.1} parent=0 // pred_region
    _
  $region13: #{tpu_custom_call.1} parent=0 // pred_fallthru
    _
  %v14 = vld [vmem:[%s0] sm:$0xff]
  %v15 = vld [vmem:[%s1] sm:$0xff]
  %v16 = vld [vmem:[%s2] sm:$0xf]
  %v17 = vld [vmem:[%s2 + $0x4] sm:$0xf]
  %v18 = vld [vmem:[%s2 + $0x8] sm:$0xf]
  %v19 = vld [vmem:[%s2 + $0xc] sm:$0xf]
  %v20 = vunpack.c.l.bf16 %v16
  %v21 = vunpack.c.l.bf16 %v17
  %v22 = vunpack.c.l.bf16 %v18
  %v23 = vunpack.c.l.bf16 %v19
  %v24 = vld [vmem:[%s2 + $0x5c] sm:$0x1]
  %v25 = vunpack.c.l.bf16 %v24
  %v26 = vlaneseq
  %v27 = vshrl.u32 %v26, 7
  %v28 = vsub.s32 0, %v27
  %v29 = vrot.slane %v25, %v28
  %vm30 = vcmask 261120
  %v32 = vsel %vm30, %v14, 0
  %34 = vmatprep.subr.mxu0 0.0
  %35 = vmatpush1.msra.mxu0 %v20
  %36 = vmatprep.subr.mxu0 0.0
  %37 = vmatpush1.msra.mxu0 %v21
  %38 = vmatprep.subr.mxu0 0.0
  %39 = vmatpush1.msra.mxu0 %v22
  %40 = vmatprep.subr.mxu0 0.0
  %41 = vmatpush1.msra.mxu0 %v23
  %42 = vmatprep.subr.mxu0 0.0
  %43 = vmatpush1.msra.mxu0 0.0
  %44 = vmatprep.subr.mxu0 0.0
  %45 = vmatpush1.msra.mxu0 0.0
  %46 = vmatprep.subr.mxu0 0.0
  %47 = vmatpush1.msra.mxu0 0.0
  %48 = vmatprep.subr.mxu0 0.0
  %49 = vmatpush1.msra.mxu0 0.0
  %50 = vmatprep.subr.mxu0 0.0
  %51 = vmatpush1.msra.mxu0 0.0
  %52 = vmatprep.subr.mxu0 0.0
  %53 = vmatpush1.msra.mxu0 0.0
  %54 = vmatprep.subr.mxu0 0.0
  %55 = vmatpush1.msra.mxu0 0.0
  %56 = vmatprep.subr.mxu0 0.0
  %57 = vmatpush1.msra.mxu0 0.0
  %58 = vmatprep.subr.mxu0 0.0
  %59 = vmatpush1.msra.mxu0 0.0
  %60 = vmatprep.subr.mxu0 0.0
  %61 = vmatpush1.msra.mxu0 0.0
  %62 = vmatprep.subr.mxu0 0.0
  %63 = vmatpush1.msra.mxu0 0.0
  %64 = vmatprep.subr.mxu0 0.0
  %65 = vmatpush1.msra.mxu0 0.0
  %66 = vmatprep.subr.mxu0 0.0
  %67 = vmatpush1.msra.mxu0 0.0
  %68 = vmatprep.subr.mxu0 0.0
  %69 = vmatpush1.msra.mxu0 0.0
  %70 = vmatprep.subr.mxu0 0.0
  %71 = vmatpush1.msra.mxu0 0.0
  %72 = vmatprep.subr.mxu0 0.0
  %73 = vmatpush1.msra.mxu0 0.0
  %74 = vmatprep.subr.mxu0 0.0
  %75 = vmatpush1.msra.mxu0 0.0
  %76 = vmatprep.subr.mxu0 0.0
  %77 = vmatpush1.msra.mxu0 0.0
  %78 = vmatprep.subr.mxu0 0.0
  %79 = vmatpush1.msra.mxu0 0.0
  %80 = vmatprep.subr.mxu0 0.0
  %81 = vmatpush1.msra.mxu0 0.0
  %82 = vmatprep.subr.mxu0 0.0
  %83 = vmatpush1.msra.mxu0 0.0
  %84 = vmatprep.subr.mxu0 0.0
  %85 = vmatpush1.msra.mxu0 0.0
  %86 = vmatprep.subr.mxu0 0.0
  %87 = vmatpush1.msra.mxu0 0.0
  %88 = vmatprep.subr.mxu0 0.0
  %89 = vmatpush1.msra.mxu0 0.0
  %90 = vmatprep.subr.mxu0 0.0
  %91 = vmatpush1.msra.mxu0 0.0
  %92 = vmatprep.subr.mxu0 0.0
  %93 = vmatpush1.msra.mxu0 0.0
  %94 = vmatprep.subr.mxu0 0.0
  %95 = vmatpush1.msra.mxu0 0.0
  %96 = vmatprep.subr.mxu0 0.0
  %97 = vmatpush1.msra.mxu0 0.0
  %98 = vmatprep.mubr.f32.mxu0 0.0
  %99 = vmatmul.mubr.f32.gmra.mrb[0].mxu0 %v32
  %v100 = vpop.f32.mrb[0].mxu0
  %v101 = vadd.f32 %v29, %v100
  %v102 = vpop.f32.mrb[0].mxu0
  %103 = vdwg.mxu0
  %v104 = vmax.f32 %v101, 0.0
  %v105 = vld [vmem:[%s2 + $0x10] sm:$0xf]
  %v106 = vld [vmem:[%s2 + $0x14] sm:$0xf]
  %v107 = vunpack.c.l.bf16 %v105
  %v108 = vunpack.c.l.bf16 %v106
  %v109 = vld [vmem:[%s2 + $0x18] sm:$0x3]
  %v110 = vunpack.c.l.bf16 %v109
  %vm111 = vcmask 31744
  %v113 = vsel %vm111, %v15, 0
  %vm115 = vcmask 1043456
  %v117 = vsel %vm115, %v110, 0
  %119 = vmatprep.subr.mxu0 0.0
  %120 = vmatpush1.msra.mxu0 %v117
  %121 = vmatprep.subr.mxu0 0.0
  %122 = vmatpush1.msra.mxu0 0.0
  %123 = vmatprep.subr.mxu0 0.0
  %124 = vmatpush1.msra.mxu0 0.0
  %125 = vmatprep.subr.mxu0 0.0
  %126 = vmatpush1.msra.mxu0 0.0
  %127 = vmatprep.subr.mxu0 0.0
  %128 = vmatpush1.msra.mxu0 0.0
  %129 = vmatprep.subr.mxu0 0.0
  %130 = vmatpush1.msra.mxu0 0.0
  %131 = vmatprep.subr.mxu0 0.0
  %132 = vmatpush1.msra.mxu0 0.0
  %133 = vmatprep.subr.mxu0 0.0
  %134 = vmatpush1.msra.mxu0 0.0
  %135 = vmatprep.subr.mxu0 0.0
  %136 = vmatpush1.msra.mxu0 0.0
  %137 = vmatprep.subr.mxu0 0.0
  %138 = vmatpush1.msra.mxu0 0.0
  %139 = vmatprep.subr.mxu0 0.0
  %140 = vmatpush1.msra.mxu0 0.0
  %141 = vmatprep.subr.mxu0 0.0
  %142 = vmatpush1.msra.mxu0 0.0
  %143 = vmatprep.subr.mxu0 0.0
  %144 = vmatpush1.msra.mxu0 0.0
  %145 = vmatprep.subr.mxu0 0.0
  %146 = vmatpush1.msra.mxu0 0.0
  %147 = vmatprep.subr.mxu0 0.0
  %148 = vmatpush1.msra.mxu0 0.0
  %149 = vmatprep.subr.mxu0 0.0
  %150 = vmatpush1.msra.mxu0 0.0
  %151 = vmatprep.subr.mxu0 0.0
  %152 = vmatpush1.msra.mxu0 0.0
  %153 = vmatprep.subr.mxu0 0.0
  %154 = vmatpush1.msra.mxu0 0.0
  %155 = vmatprep.subr.mxu0 0.0
  %156 = vmatpush1.msra.mxu0 0.0
  %157 = vmatprep.subr.mxu0 0.0
  %158 = vmatpush1.msra.mxu0 0.0
  %159 = vmatprep.subr.mxu0 0.0
  %160 = vmatpush1.msra.mxu0 0.0
  %161 = vmatprep.subr.mxu0 0.0
  %162 = vmatpush1.msra.mxu0 0.0
  %163 = vmatprep.subr.mxu0 0.0
  %164 = vmatpush1.msra.mxu0 0.0
  %165 = vmatprep.subr.mxu0 0.0
  %166 = vmatpush1.msra.mxu0 0.0
  %167 = vmatprep.subr.mxu0 0.0
  %168 = vmatpush1.msra.mxu0 0.0
  %169 = vmatprep.subr.mxu0 0.0
  %170 = vmatpush1.msra.mxu0 0.0
  %171 = vmatprep.subr.mxu0 0.0
  %172 = vmatpush1.msra.mxu0 0.0
  %173 = vmatprep.subr.mxu0 0.0
  %174 = vmatpush1.msra.mxu0 0.0
  %175 = vmatprep.subr.mxu0 0.0
  %176 = vmatpush1.msra.mxu0 0.0
  %177 = vmatprep.subr.mxu0 0.0
  %178 = vmatpush1.msra.mxu0 0.0
  %179 = vmatprep.subr.mxu0 0.0
  %180 = vmatpush1.msra.mxu0 0.0
  %181 = vmatprep.subr.mxu0 0.0
  %182 = vmatpush1.msra.mxu0 0.0
  %183 = vmatprep.mubr.f32.mxu0 0.0
  %184 = vmatmul.mubr.f32.gmra.mrb[0].mxu0 %v113
  %v185 = vpop.f32.mrb[0].mxu0
  %v186 = vadd.f32 0.0, %v185
  %v187 = vpop.f32.mrb[0].mxu0
  %188 = vdwg.mxu0
  %vm189 = vcmask 130048
  %v191 = vsel %vm189, %v104, 0
  %193 = vmatprep.subr.mxu0 0.0
  %194 = vmatpush1.msra.mxu0 %v107
  %195 = vmatprep.subr.mxu0 0.0
  %196 = vmatpush1.msra.mxu0 %v108
  %197 = vmatprep.subr.mxu0 0.0
  %198 = vmatpush1.msra.mxu0 0.0
  %199 = vmatprep.subr.mxu0 0.0
  %200 = vmatpush1.msra.mxu0 0.0
  %201 = vmatprep.subr.mxu0 0.0
  %202 = vmatpush1.msra.mxu0 0.0
  %203 = vmatprep.subr.mxu0 0.0
  %204 = vmatpush1.msra.mxu0 0.0
  %205 = vmatprep.subr.mxu0 0.0
  %206 = vmatpush1.msra.mxu0 0.0
  %207 = vmatprep.subr.mxu0 0.0
  %208 = vmatpush1.msra.mxu0 0.0
  %209 = vmatprep.subr.mxu0 0.0
  %210 = vmatpush1.msra.mxu0 0.0
  %211 = vmatprep.subr.mxu0 0.0
  %212 = vmatpush1.msra.mxu0 0.0
  %213 = vmatprep.subr.mxu0 0.0
  %214 = vmatpush1.msra.mxu0 0.0
  %215 = vmatprep.subr.mxu0 0.0
  %216 = vmatpush1.msra.mxu0 0.0
  %217 = vmatprep.subr.mxu0 0.0
  %218 = vmatpush1.msra.mxu0 0.0
  %219 = vmatprep.subr.mxu0 0.0
  %220 = vmatpush1.msra.mxu0 0.0
  %221 = vmatprep.subr.mxu0 0.0
  %222 = vmatpush1.msra.mxu0 0.0
  %223 = vmatprep.subr.mxu0 0.0
  %224 = vmatpush1.msra.mxu0 0.0
  %225 = vmatprep.subr.mxu0 0.0
  %226 = vmatpush1.msra.mxu0 0.0
  %227 = vmatprep.subr.mxu0 0.0
  %228 = vmatpush1.msra.mxu0 0.0
  %229 = vmatprep.subr.mxu0 0.0
  %230 = vmatpush1.msra.mxu0 0.0
  %231 = vmatprep.subr.mxu0 0.0
  %232 = vmatpush1.msra.mxu0 0.0
  %233 = vmatprep.subr.mxu0 0.0
  %234 = vmatpush1.msra.mxu0 0.0
  %235 = vmatprep.subr.mxu0 0.0
  %236 = vmatpush1.msra.mxu0 0.0
  %237 = vmatprep.subr.mxu0 0.0
  %238 = vmatpush1.msra.mxu0 0.0
  %239 = vmatprep.subr.mxu0 0.0
  %240 = vmatpush1.msra.mxu0 0.0
  %241 = vmatprep.subr.mxu0 0.0
  %242 = vmatpush1.msra.mxu0 0.0
  %243 = vmatprep.subr.mxu0 0.0
  %244 = vmatpush1.msra.mxu0 0.0
  %245 = vmatprep.subr.mxu0 0.0
  %246 = vmatpush1.msra.mxu0 0.0
  %247 = vmatprep.subr.mxu0 0.0
  %248 = vmatpush1.msra.mxu0 0.0
  %249 = vmatprep.subr.mxu0 0.0
  %250 = vmatpush1.msra.mxu0 0.0
  %251 = vmatprep.subr.mxu0 0.0
  %252 = vmatpush1.msra.mxu0 0.0
  %253 = vmatprep.subr.mxu0 0.0
  %254 = vmatpush1.msra.mxu0 0.0
  %255 = vmatprep.subr.mxu0 0.0
  %256 = vmatpush1.msra.mxu0 0.0
  %257 = vmatprep.mubr.f32.mxu0 0.0
  %258 = vmatmul.mubr.f32.gmra.mrb[0].mxu0 %v191
  %v259 = vpop.f32.mrb[0].mxu0
  %v260 = vadd.f32 %v186, %v259
  %v261 = vpop.f32.mrb[0].mxu0
  %262 = vdwg.mxu0
  %v263 = vlaneseq
  %v264 = vshrl.u32 %v263, 7
  %v265 = vsub.s32 1, %v264
  %v266 = vrot.slane %v25, %v265
  %v267 = vadd.f32 %v260, %v266
  %v268 = vmax.f32 %v267, 0.0
  %v269 = vld [vmem:[%s2 + $0x1c] sm:$0xf]
  %v270 = vld [vmem:[%s2 + $0x20] sm:$0xf]
  %v271 = vld [vmem:[%s2 + $0x24] sm:$0xf]
  %v272 = vld [vmem:[%s2 + $0x28] sm:$0xf]
  %v273 = vld [vmem:[%s2 + $0x2c] sm:$0xf]
  %v274 = vld [vmem:[%s2 + $0x30] sm:$0xf]
  %v275 = vld [vmem:[%s2 + $0x34] sm:$0xf]
  %v276 = vld [vmem:[%s2 + $0x38] sm:$0xf]
  %v277 = vunpack.c.l.bf16 %v269
  %v278 = vunpack.c.l.bf16 %v270
  %v279 = vunpack.c.l.bf16 %v271
  %v280 = vunpack.c.l.bf16 %v272
  %v281 = vunpack.c.l.bf16 %v273
  %v282 = vunpack.c.l.bf16 %v274
  %v283 = vunpack.c.l.bf16 %v275
  %v284 = vunpack.c.l.bf16 %v276
  %v285 = vld [vmem:[%s2 + $0x5c] sm:$0x2]
  %v286 = vunpack.c.l.bf16 %v285
  %v287 = vlaneseq
  %v288 = vshrl.u32 %v287, 7
  %v289 = vsub.s32 2, %v288
  %v290 = vrot.slane %v286, %v289
  %vm291 = vcmask 523264
  %v293 = vsel %vm291, %v268, 0
  %295 = vmatprep.subr.mxu0 0.0
  %296 = vmatpush1.msra.mxu0 %v277
  %297 = vmatprep.subr.mxu0 0.0
  %298 = vmatpush1.msra.mxu0 %v278
  %299 = vmatprep.subr.mxu0 0.0
  %300 = vmatpush1.msra.mxu0 %v279
  %301 = vmatprep.subr.mxu0 0.0
  %302 = vmatpush1.msra.mxu0 %v280
  %303 = vmatprep.subr.mxu0 0.0
  %304 = vmatpush1.msra.mxu0 %v281
  %305 = vmatprep.subr.mxu0 0.0
  %306 = vmatpush1.msra.mxu0 %v282
  %307 = vmatprep.subr.mxu0 0.0
  %308 = vmatpush1.msra.mxu0 %v283
  %309 = vmatprep.subr.mxu0 0.0
  %310 = vmatpush1.msra.mxu0 %v284
  %311 = vmatprep.subr.mxu0 0.0
  %312 = vmatpush1.msra.mxu0 0.0
  %313 = vmatprep.subr.mxu0 0.0
  %314 = vmatpush1.msra.mxu0 0.0
  %315 = vmatprep.subr.mxu0 0.0
  %316 = vmatpush1.msra.mxu0 0.0
  %317 = vmatprep.subr.mxu0 0.0
  %318 = vmatpush1.msra.mxu0 0.0
  %319 = vmatprep.subr.mxu0 0.0
  %320 = vmatpush1.msra.mxu0 0.0
  %321 = vmatprep.subr.mxu0 0.0
  %322 = vmatpush1.msra.mxu0 0.0
  %323 = vmatprep.subr.mxu0 0.0
  %324 = vmatpush1.msra.mxu0 0.0
  %325 = vmatprep.subr.mxu0 0.0
  %326 = vmatpush1.msra.mxu0 0.0
  %327 = vmatprep.subr.mxu0 0.0
  %328 = vmatpush1.msra.mxu0 0.0
  %329 = vmatprep.subr.mxu0 0.0
  %330 = vmatpush1.msra.mxu0 0.0
  %331 = vmatprep.subr.mxu0 0.0
  %332 = vmatpush1.msra.mxu0 0.0
  %333 = vmatprep.subr.mxu0 0.0
  %334 = vmatpush1.msra.mxu0 0.0
  %335 = vmatprep.subr.mxu0 0.0
  %336 = vmatpush1.msra.mxu0 0.0
  %337 = vmatprep.subr.mxu0 0.0
  %338 = vmatpush1.msra.mxu0 0.0
  %339 = vmatprep.subr.mxu0 0.0
  %340 = vmatpush1.msra.mxu0 0.0
  %341 = vmatprep.subr.mxu0 0.0
  %342 = vmatpush1.msra.mxu0 0.0
  %343 = vmatprep.subr.mxu0 0.0
  %344 = vmatpush1.msra.mxu0 0.0
  %345 = vmatprep.subr.mxu0 0.0
  %346 = vmatpush1.msra.mxu0 0.0
  %347 = vmatprep.subr.mxu0 0.0
  %348 = vmatpush1.msra.mxu0 0.0
  %349 = vmatprep.subr.mxu0 0.0
  %350 = vmatpush1.msra.mxu0 0.0
  %351 = vmatprep.subr.mxu0 0.0
  %352 = vmatpush1.msra.mxu0 0.0
  %353 = vmatprep.subr.mxu0 0.0
  %354 = vmatpush1.msra.mxu0 0.0
  %355 = vmatprep.subr.mxu0 0.0
  %356 = vmatpush1.msra.mxu0 0.0
  %357 = vmatprep.subr.mxu0 0.0
  %358 = vmatpush1.msra.mxu0 0.0
  %359 = vmatprep.mubr.f32.mxu0 0.0
  %360 = vmatmul.mubr.f32.gmra.mrb[0].mxu0 %v293
  %v361 = vpop.f32.mrb[0].mxu0
  %v362 = vadd.f32 %v290, %v361
  %v363 = vpop.f32.mrb[0].mxu0
  %364 = vdwg.mxu0
  %v365 = vmax.f32 %v362, 0.0
  %v366 = vld [vmem:[%s2 + $0x3c] sm:$0xf]
  %v367 = vld [vmem:[%s2 + $0x40] sm:$0xf]
  %v368 = vld [vmem:[%s2 + $0x44] sm:$0xf]
  %v369 = vld [vmem:[%s2 + $0x48] sm:$0xf]
  %v370 = vld [vmem:[%s2 + $0x4c] sm:$0xf]
  %v371 = vld [vmem:[%s2 + $0x50] sm:$0xf]
  %v372 = vld [vmem:[%s2 + $0x54] sm:$0xf]
  %v373 = vld [vmem:[%s2 + $0x58] sm:$0xf]
  %v374 = vunpack.c.l.bf16 %v366
  %v375 = vunpack.c.l.bf16 %v367
  %v376 = vunpack.c.l.bf16 %v368
  %v377 = vunpack.c.l.bf16 %v369
  %v378 = vunpack.c.l.bf16 %v370
  %v379 = vunpack.c.l.bf16 %v371
  %v380 = vunpack.c.l.bf16 %v372
  %v381 = vunpack.c.l.bf16 %v373
  %v382 = vlaneseq
  %v383 = vshrl.u32 %v382, 7
  %v384 = vsub.s32 3, %v383
  %v385 = vrot.slane %v286, %v384
  %v387 = vsel %vm291, %v365, 0
  %389 = vmatprep.subr.mxu0 0.0
  %390 = vmatpush1.msra.mxu0 %v374
  %391 = vmatprep.subr.mxu0 0.0
  %392 = vmatpush1.msra.mxu0 %v375
  %393 = vmatprep.subr.mxu0 0.0
  %394 = vmatpush1.msra.mxu0 %v376
  %395 = vmatprep.subr.mxu0 0.0
  %396 = vmatpush1.msra.mxu0 %v377
  %397 = vmatprep.subr.mxu0 0.0
  %398 = vmatpush1.msra.mxu0 %v378
  %399 = vmatprep.subr.mxu0 0.0
  %400 = vmatpush1.msra.mxu0 %v379
  %401 = vmatprep.subr.mxu0 0.0
  %402 = vmatpush1.msra.mxu0 %v380
  %403 = vmatprep.subr.mxu0 0.0
  %404 = vmatpush1.msra.mxu0 %v381
  %405 = vmatprep.subr.mxu0 0.0
  %406 = vmatpush1.msra.mxu0 0.0
  %407 = vmatprep.subr.mxu0 0.0
  %408 = vmatpush1.msra.mxu0 0.0
  %409 = vmatprep.subr.mxu0 0.0
  %410 = vmatpush1.msra.mxu0 0.0
  %411 = vmatprep.subr.mxu0 0.0
  %412 = vmatpush1.msra.mxu0 0.0
  %413 = vmatprep.subr.mxu0 0.0
  %414 = vmatpush1.msra.mxu0 0.0
  %415 = vmatprep.subr.mxu0 0.0
  %416 = vmatpush1.msra.mxu0 0.0
  %417 = vmatprep.subr.mxu0 0.0
  %418 = vmatpush1.msra.mxu0 0.0
  %419 = vmatprep.subr.mxu0 0.0
  %420 = vmatpush1.msra.mxu0 0.0
  %421 = vmatprep.subr.mxu0 0.0
  %422 = vmatpush1.msra.mxu0 0.0
  %423 = vmatprep.subr.mxu0 0.0
  %424 = vmatpush1.msra.mxu0 0.0
  %425 = vmatprep.subr.mxu0 0.0
  %426 = vmatpush1.msra.mxu0 0.0
  %427 = vmatprep.subr.mxu0 0.0
  %428 = vmatpush1.msra.mxu0 0.0
  %429 = vmatprep.subr.mxu0 0.0
  %430 = vmatpush1.msra.mxu0 0.0
  %431 = vmatprep.subr.mxu0 0.0
  %432 = vmatpush1.msra.mxu0 0.0
  %433 = vmatprep.subr.mxu0 0.0
  %434 = vmatpush1.msra.mxu0 0.0
  %435 = vmatprep.subr.mxu0 0.0
  %436 = vmatpush1.msra.mxu0 0.0
  %437 = vmatprep.subr.mxu0 0.0
  %438 = vmatpush1.msra.mxu0 0.0
  %439 = vmatprep.subr.mxu0 0.0
  %440 = vmatpush1.msra.mxu0 0.0
  %441 = vmatprep.subr.mxu0 0.0
  %442 = vmatpush1.msra.mxu0 0.0
  %443 = vmatprep.subr.mxu0 0.0
  %444 = vmatpush1.msra.mxu0 0.0
  %445 = vmatprep.subr.mxu0 0.0
  %446 = vmatpush1.msra.mxu0 0.0
  %447 = vmatprep.subr.mxu0 0.0
  %448 = vmatpush1.msra.mxu0 0.0
  %449 = vmatprep.subr.mxu0 0.0
  %450 = vmatpush1.msra.mxu0 0.0
  %451 = vmatprep.subr.mxu0 0.0
  %452 = vmatpush1.msra.mxu0 0.0
  %453 = vmatprep.mubr.f32.mxu0 0.0
  %454 = vmatmul.mubr.f32.gmra.mrb[0].mxu0 %v387
  %v455 = vpop.f32.mrb[0].mxu0
  %v456 = vadd.f32 %v385, %v455
  %v457 = vpop.f32.mrb[0].mxu0
  %458 = vdwg.mxu0
  %vm459 = vcmask 15360
  %460 = vst.msk [vmem:[%s3] sm:$0xff] %vm459, %v456
  // Predicated region
  $region14: #{tpu_custom_call.1} parent=0 // pred_check
    _
  $region15: #{tpu_custom_call.1} parent=0 // pred_check_branch
    %462 = sbr.rel (0) target = $region17
  $region16: #{tpu_custom_call.1} parent=0 // pred_region
    _
  $region17: #{tpu_custom_call.1} parent=0 // pred_fallthru
    _
  // Predicated region
  $region18: #{tpu_custom_call.1} parent=0 // pred_check
    _
  $region19: #{tpu_custom_call.1} parent=0 // pred_check_branch
    %464 = sbr.rel (0) target = $region21
  $region20: #{tpu_custom_call.1} parent=0 // pred_region
    _
  $region21: #{tpu_custom_call.1} parent=0 // pred_fallthru
    _

</llo_original>
